<compile_context>
chip_gen: v5e
topology: v5e:2x2
jax: 0.10.0
libtpu: 0.0.40
codegen_flags: <defaults>
</compile_context>

<pallas_src>
import jax
import jax.numpy as jnp
from jax.experimental import pallas as pl
from jax.experimental.pallas import tpu as pltpu

LANE = 128          # vreg lane width
SUBLANE_BF16 = 16   # safe row granularity for bf16-tiled batch blocks


def _round_up(x, m):
    return ((x + m - 1) // m) * m


def policy_kernel(x_ref, w1_ref, b1_ref, w2_ref, b2_ref, o_ref):
    # fc1: bf16 operands on the MXU, f32 accumulation; bias + ReLU on the VPU in f32
    h = jnp.dot(x_ref[...], w1_ref[...], preferred_element_type=jnp.float32)
    h = jnp.maximum(h + b1_ref[...], 0.0)
    # fc2: cast activation to bf16 for the MXU, keep f32 accumulation; out_dim un-padded
    logits = jnp.dot(h.astype(jnp.bfloat16), w2_ref[...],
                     preferred_element_type=jnp.float32) + b2_ref[...]
    # numerically stable softmax over the real out_dim lanes; exact division so
    # every row sums to 1 to f32 precision (approx reciprocal was the bug source)
    m = jnp.max(logits, axis=-1, keepdims=True)
    e = jnp.exp(logits - m)
    denom = jnp.sum(e, axis=-1, keepdims=True)
    o_ref[...] = (e / denom).astype(o_ref.dtype)


def prepare_params(w1, b1, w2, b2):
    """One-time parameter prep (hoisted out of the per-call path).

    Pads only the hidden dim to 128 lanes (weights are resident, fetched once);
    in_dim and out_dim stay exact so streamed HBM bytes are only real data.
    """
    in_dim, hid = w1.shape
    out_dim = w2.shape[1]
    dh_p = _round_up(hid, LANE)

    w1p = jnp.zeros((in_dim, dh_p), jnp.bfloat16).at[:, :hid].set(w1.astype(jnp.bfloat16))
    b1p = jnp.zeros((1, dh_p), jnp.float32).at[:, :hid].set(
        b1.reshape(1, -1).astype(jnp.float32))
    # padded hidden lanes: b1 = 0 -> relu(0) = 0, and w2 rows = 0 -> no logit effect
    w2p = jnp.zeros((dh_p, out_dim), jnp.bfloat16).at[:hid, :].set(w2.astype(jnp.bfloat16))
    b2p = b2.reshape(1, -1).astype(jnp.float32)
    return w1p, b1p, w2p, b2p


def policy_forward(x, params, *, max_tile_b=1024, min_grid=2):
    w1p, b1p, w2p, b2p = params
    batch, in_dim = x.shape
    dh_p = w1p.shape[1]
    out_dim = w2p.shape[1]

    # Batch tiling: big tiles (mem-bound kernel, ~0.35us/step overhead), but keep
    # >= min_grid steps when the batch is large enough so v7x's 2 TCs share work,
    # and split the *real* batch first so awkward sizes aren't over-padded.
    n_tiles = max(pl.cdiv(batch, max_tile_b),
                  min(min_grid, pl.cdiv(batch, 2 * SUBLANE_BF16)))
    tile_b = _round_up(pl.cdiv(batch, n_tiles), SUBLANE_BF16)
    b_pad = _round_up(batch, tile_b)
    grid = (b_pad // tile_b,)

    # x stays un-padded along features (block last dim == full array dim keeps
    # per-tile HBM regions contiguous); only batch rows get zero-padded.
    xp = x.astype(jnp.bfloat16)
    if b_pad != batch:
        xp = jnp.zeros((b_pad, in_dim), jnp.bfloat16).at[:batch].set(xp)

    cost = pl.CostEstimate(
        flops=2 * b_pad * (in_dim * dh_p + dh_p * out_dim),
        transcendentals=b_pad * out_dim,
        bytes_accessed=(xp.size * 2 + w1p.size * 2 + w2p.size * 2
                        + b1p.size * 4 + b2p.size * 4 + b_pad * out_dim * 4),
    )

    out = pl.pallas_call(
        policy_kernel,
        out_shape=jax.ShapeDtypeStruct((b_pad, out_dim), jnp.float32),
        grid_spec=pltpu.PrefetchScalarGridSpec(
            num_scalar_prefetch=0,
            grid=grid,
            in_specs=[
                pl.BlockSpec((tile_b, in_dim), lambda i: (i, 0)),   # x: streamed over batch
                pl.BlockSpec((in_dim, dh_p), lambda i: (0, 0)),     # w1: resident
                pl.BlockSpec((1, dh_p), lambda i: (0, 0)),          # b1: resident
                pl.BlockSpec((dh_p, out_dim), lambda i: (0, 0)),    # w2: resident
                pl.BlockSpec((1, out_dim), lambda i: (0, 0)),       # b2: resident
            ],
            out_specs=pl.BlockSpec((tile_b, out_dim), lambda i: (i, 0)),
        ),
        compiler_params=pltpu.CompilerParams(
            dimension_semantics=("parallel",),       # megacore can split the batch grid
            vmem_limit_bytes=32 * 1024 * 1024,       # allows 1024-row tiles even on v5e
        ),
        cost_estimate=cost,
    )(xp, w1p, b1p, w2p, b2p)

    # drop padded batch rows -> exact PolicyNetwork output shape
    return out[:batch]


def init_params(key, input_dim, hidden_dim, output_dim):
    # Deterministic init mimicking nn.Linear's U(-1/sqrt(fan_in), 1/sqrt(fan_in)).
    k1, k2, k3, k4 = jax.random.split(key, 4)
    lim1 = 1.0 / jnp.sqrt(input_dim)
    lim2 = 1.0 / jnp.sqrt(hidden_dim)
    w1 = jax.random.uniform(k1, (input_dim, hidden_dim), jnp.float32, -lim1, lim1)
    b1 = jax.random.uniform(k2, (1, hidden_dim), jnp.float32, -lim1, lim1)
    w2 = jax.random.uniform(k3, (hidden_dim, output_dim), jnp.float32, -lim2, lim2)
    b2 = jax.random.uniform(k4, (1, output_dim), jnp.float32, -lim2, lim2)
    return w1, b1, w2, b2


if __name__ == "__main__":
    batch, input_dim, hidden_dim, output_dim = 8, 32, 64, 8

    key = jax.random.PRNGKey(0)
    kx, kp = jax.random.split(key)
    x = jax.random.normal(kx, (batch, input_dim), jnp.float32)
    w1, b1, w2, b2 = init_params(kp, input_dim, hidden_dim, output_dim)

    # one-time parameter prep (would live at init / param-update time in a rollout loop)
    params = prepare_params(w1, b1, w2, b2)

    out = policy_forward(x, params)
    out = jax.block_until_ready(out)

    # reference emulating the kernel's bf16 MXU operands (f32 accumulation)
    bf = lambda a: a.astype(jnp.bfloat16).astype(jnp.float32)
    h_ref = jnp.maximum(bf(x) @ bf(w1) + b1, 0.0)
    ref = jax.nn.softmax(bf(h_ref) @ bf(w2) + b2, axis=-1)

    assert out.shape == (batch, output_dim)
    assert jnp.allclose(out, ref, atol=2e-3, rtol=2e-3)
    assert jnp.allclose(jnp.sum(out, axis=-1), 1.0, atol=1e-3)

    # looser check against the pure-f32 PyTorch-equivalent reference
    h_f32 = jnp.maximum(x @ w1 + b1, 0.0)
    ref_f32 = jax.nn.softmax(h_f32 @ w2 + b2, axis=-1)
    assert jnp.allclose(out, ref_f32, atol=2e-2, rtol=2e-2)

    print("KERNEL_OK")
</pallas_src>

<mosaic_0001>
module attributes {stable_mosaic.version = 11 : i64} {
  func.func @policy_kernel(%arg0: i32, %arg1: memref<16x32xbf16, #tpu.memory_space<vmem>>, %arg2: memref<32x128xbf16, #tpu.memory_space<vmem>>, %arg3: memref<1x128xf32, #tpu.memory_space<vmem>>, %arg4: memref<128x8xbf16, #tpu.memory_space<vmem>>, %arg5: memref<1x8xf32, #tpu.memory_space<vmem>>, %arg6: memref<16x8xf32, #tpu.memory_space<vmem>>) attributes {dimension_semantics = [#tpu.dimension_semantics<parallel>], iteration_bounds = array<i64: 1>, scalar_prefetch = 0 : i64, scratch_operands = 0 : i64, tpu.core_type = #tpu.core_type<tc>, window_params = [{transform_indices = @transform_0, window_bounds = array<i64: 16, 32>}, {pipeline_mode = #tpu.pipeline_mode<synchronous>, transform_indices = @transform_1, window_bounds = array<i64: 32, 128>}, {pipeline_mode = #tpu.pipeline_mode<synchronous>, transform_indices = @transform_2, window_bounds = array<i64: 1, 128>}, {pipeline_mode = #tpu.pipeline_mode<synchronous>, transform_indices = @transform_3, window_bounds = array<i64: 128, 8>}, {pipeline_mode = #tpu.pipeline_mode<synchronous>, transform_indices = @transform_4, window_bounds = array<i64: 1, 8>}, {transform_indices = @transform_5, window_bounds = array<i64: 16, 8>}]} {
    %c0 = arith.constant 0 : index
    %c0_0 = arith.constant 0 : index
    %0 = vector.load %arg1[%c0, %c0_0] : memref<16x32xbf16, #tpu.memory_space<vmem>>, vector<16x32xbf16>
    %c0_1 = arith.constant 0 : index
    %c0_2 = arith.constant 0 : index
    %1 = vector.load %arg2[%c0_1, %c0_2] : memref<32x128xbf16, #tpu.memory_space<vmem>>, vector<32x128xbf16>
    %cst = arith.constant dense<0.000000e+00> : vector<16x128xf32>
    %2 = tpu.matmul %0, %1, %cst {dimension_numbers = #tpu.dot_dimension_numbers<[1], [0], [0], [1], [0, 0, 1, 1], [], []>} : vector<16x32xbf16>, vector<32x128xbf16>, vector<16x128xf32> -> vector<16x128xf32>
    %c0_3 = arith.constant 0 : index
    %c0_4 = arith.constant 0 : index
    %3 = vector.load %arg3[%c0_3, %c0_4] : memref<1x128xf32, #tpu.memory_space<vmem>>, vector<1x128xf32>
    %4 = vector.broadcast %3 : vector<1x128xf32> to vector<16x128xf32>
    %5 = arith.addf %2, %4 : vector<16x128xf32>
    %cst_5 = arith.constant 0.000000e+00 : f32
    %6 = vector.broadcast %cst_5 : f32 to vector<16x128xf32>
    %7 = arith.maximumf %5, %6 : vector<16x128xf32>
    %8 = arith.truncf %7 : vector<16x128xf32> to vector<16x128xbf16>
    %c0_6 = arith.constant 0 : index
    %c0_7 = arith.constant 0 : index
    %9 = vector.load %arg4[%c0_6, %c0_7] : memref<128x8xbf16, #tpu.memory_space<vmem>>, vector<128x8xbf16>
    %cst_8 = arith.constant dense<0.000000e+00> : vector<16x8xf32>
    %10 = tpu.matmul %8, %9, %cst_8 {dimension_numbers = #tpu.dot_dimension_numbers<[1], [0], [0], [1], [0, 0, 1, 1], [], []>} : vector<16x128xbf16>, vector<128x8xbf16>, vector<16x8xf32> -> vector<16x8xf32>
    %c0_9 = arith.constant 0 : index
    %c0_10 = arith.constant 0 : index
    %11 = vector.load %arg5[%c0_9, %c0_10] : memref<1x8xf32, #tpu.memory_space<vmem>>, vector<1x8xf32>
    %12 = vector.broadcast %11 : vector<1x8xf32> to vector<16x8xf32>
    %13 = arith.addf %10, %12 : vector<16x8xf32>
    %cst_11 = arith.constant dense<0xFF800000> : vector<16xf32>
    %14 = vector.multi_reduction <maximumf>, %13, %cst_11 [1] : vector<16x8xf32> to vector<16xf32>
    %15 = vector.shape_cast %14 : vector<16xf32> to vector<16x1xf32>
    %16 = vector.broadcast %15 : vector<16x1xf32> to vector<16x8xf32>
    %17 = arith.subf %13, %16 : vector<16x8xf32>
    %18 = math.exp %17 : vector<16x8xf32>
    %cst_12 = arith.constant dense<0.000000e+00> : vector<16xf32>
    %19 = vector.multi_reduction <add>, %18, %cst_12 [1] : vector<16x8xf32> to vector<16xf32>
    %20 = vector.shape_cast %19 : vector<16xf32> to vector<16x1xf32>
    %21 = vector.broadcast %20 : vector<16x1xf32> to vector<16x8xf32>
    %22 = arith.divf %18, %21 : vector<16x8xf32>
    %c0_13 = arith.constant 0 : index
    %c0_14 = arith.constant 0 : index
    %23 = vector.load %arg6[%c0_13, %c0_14] : memref<16x8xf32, #tpu.memory_space<vmem>>, vector<16x8xf32>
    tpu.vector_store %arg6[%c0_13, %c0_14], %22 {strides = array<i32>} : memref<16x8xf32, #tpu.memory_space<vmem>>, vector<16x8xf32>,
    return
  }
  func.func @transform_0(%arg0: i32) -> (i32, i32) {
    %c0_i32 = arith.constant 0 : i32
    %c0_i32_0 = arith.constant 0 : i32
    return %arg0, %c0_i32 : i32, i32
  }
  func.func @transform_1(%arg0: i32) -> (i32, i32) {
    %c0_i32 = arith.constant 0 : i32
    %c0_i32_0 = arith.constant 0 : i32
    %c0_i32_1 = arith.constant 0 : i32
    return %c0_i32, %c0_i32_0 : i32, i32
  }
  func.func @transform_2(%arg0: i32) -> (i32, i32) {
    %c0_i32 = arith.constant 0 : i32
    %c0_i32_0 = arith.constant 0 : i32
    %c0_i32_1 = arith.constant 0 : i32
    return %c0_i32, %c0_i32_0 : i32, i32
  }
  func.func @transform_3(%arg0: i32) -> (i32, i32) {
    %c0_i32 = arith.constant 0 : i32
    %c0_i32_0 = arith.constant 0 : i32
    %c0_i32_1 = arith.constant 0 : i32
    return %c0_i32, %c0_i32_0 : i32, i32
  }
  func.func @transform_4(%arg0: i32) -> (i32, i32) {
    %c0_i32 = arith.constant 0 : i32
    %c0_i32_0 = arith.constant 0 : i32
    %c0_i32_1 = arith.constant 0 : i32
    return %c0_i32, %c0_i32_0 : i32, i32
  }
  func.func @transform_5(%arg0: i32) -> (i32, i32) {
    %c0_i32 = arith.constant 0 : i32
    %c0_i32_0 = arith.constant 0 : i32
    return %arg0, %c0_i32 : i32, i32
  }
}

</mosaic_0001>

<llo_original>
// kernel: tpu_custom_call.1
$region0: #{tpu_custom_call.1}
  #allocation0 [shape = 'u32[]', space=smem, size = 0x4, offset = 0x4, fixed_abs, tag = 'smem constant byte address 0x4 - core index']
  #allocation1 [shape = 'u32[72,128]{1,0:T(1,128)}', space=vmem, size = 0x9000, scoped, tag = 'internal scratch']
  %s0 = inlined_call_operand.vmem [shape: bf16[16,32], index: 0, kind: input, shape index: {}]
  %s1 = inlined_call_operand.vmem [shape: bf16[32,128], index: 1, kind: input, shape index: {}]
  %s2 = inlined_call_operand.vmem [shape: f32[1,128], index: 2, kind: input, shape index: {}]
  %s3 = inlined_call_operand.vmem [shape: bf16[128,8], index: 3, kind: input, shape index: {}]
  %s4 = inlined_call_operand.vmem [shape: f32[1,8], index: 4, kind: input, shape index: {}]
  %s5 = inlined_call_operand.vmem [shape: f32[16,8], index: 5, kind: output, shape index: {}]
  %s6 = sld [smem:[#allocation0]]
  $region30: #{tpu_custom_call.1} parent=0
    _
  %s8 = ssub.s32 1, %s6
  %s9 = scalar_select 0, %s8, %s6
  // Predicated region
  $region2: #{tpu_custom_call.1} parent=0 // pred_check
    _
  $region3: #{tpu_custom_call.1} parent=0 // pred_check_branch
    %11 = sbr.rel (0) target = $region5
  $region4: #{tpu_custom_call.1} parent=0 // pred_region
    _
  $region5: #{tpu_custom_call.1} parent=0 // pred_fallthru
    _
  // Predicated region
  $region6: #{tpu_custom_call.1} parent=0 // pred_check
    _
  $region7: #{tpu_custom_call.1} parent=0 // pred_check_branch
    %13 = sbr.rel (0) target = $region9
  $region8: #{tpu_custom_call.1} parent=0 // pred_region
    _
  $region9: #{tpu_custom_call.1} parent=0 // pred_fallthru
    _
  // Predicated region
  $region10: #{tpu_custom_call.1} parent=0 // pred_check
    _
  $region11: #{tpu_custom_call.1} parent=0 // pred_check_branch
    %15 = sbr.rel (0) target = $region13
  $region12: #{tpu_custom_call.1} parent=0 // pred_region
    _
  $region13: #{tpu_custom_call.1} parent=0 // pred_fallthru
    _
  // Predicated region
  $region14: #{tpu_custom_call.1} parent=0 // pred_check
    _
  $region15: #{tpu_custom_call.1} parent=0 // pred_check_branch
    %17 = sbr.rel (0) target = $region17
  $region16: #{tpu_custom_call.1} parent=0 // pred_region
    _
  $region17: #{tpu_custom_call.1} parent=0 // pred_fallthru
    _
  // Predicated region
  $region18: #{tpu_custom_call.1} parent=0 // pred_check
    _
  $region19: #{tpu_custom_call.1} parent=0 // pred_check_branch
    %19 = sbr.rel (0) target = $region21
  $region20: #{tpu_custom_call.1} parent=0 // pred_region
    _
  $region21: #{tpu_custom_call.1} parent=0 // pred_fallthru
    _
  %v21 = vld [vmem:[%s0] sm:$0xf]
  %v22 = vld [vmem:[%s0 + $0x4] sm:$0xf]
  %v23 = vld [vmem:[%s1] sm:$0xf]
  %v24 = vld [vmem:[%s1 + $0x4] sm:$0xf]
  %v25 = vld [vmem:[%s1 + $0x8] sm:$0xf]
  %v26 = vld [vmem:[%s1 + $0xc] sm:$0xf]
  %v27 = vld [vmem:[%s2] sm:$0x1]
  %v29 = vperm.slane %v27, 0
  %v33 = vunpack.c.l.b16 %v21
  %v34 = vunpack.c.l.b16 %v22
  %v35 = vpack.c.b16 %v34, %v33
  %v40 = vunpack.c.l.b16 %v23
  %v41 = vunpack.c.l.b16 %v24
  %v42 = vunpack.c.l.b16 %v25
  %v43 = vunpack.c.l.b16 %v26
  %v44 = vpack.c.b16 %v41, %v40
  %v45 = vpack.c.b16 %v43, %v42
  %vm48 = vcmask 261120
  %v50 = vsel %vm48, %v35, 0
  %52 = vmatpush.bf16.msra.mxu0 0
  %53 = vmatpush.bf16.msra.mxu0 0
  %54 = vmatpush.bf16.msra.mxu0 0
  %55 = vmatpush.bf16.msra.mxu0 0
  %56 = vmatpush.bf16.msra.mxu0 0
  %57 = vmatpush.bf16.msra.mxu0 0
  %58 = vmatpush.bf16.msra.mxu0 %v45
  %59 = vmatpush.bf16.msra.mxu0 %v44
  %60 = vmatmul.bf16.gmra.mxu0 %v50
  %v61 = vpop.f32.mrf.mxu0
  %v62 = vadd.f32 %v29, %v61
  %v63 = vpop.f32.mrf.mxu0
  %v64 = vadd.f32 %v29, %v63
  %65 = vdwg.mxu0
  %v66 = vmax.f32 %v62, 0.0
  %v67 = vmax.f32 %v64, 0.0
  %v68 = vpack.c.bf16 %v67, %v66
  %v69 = vld [vmem:[%s3] sm:$0xf]
  %v70 = vld [vmem:[%s3 + $0x4] sm:$0xf]
  %v71 = vld [vmem:[%s3 + $0x8] sm:$0xf]
  %v72 = vld [vmem:[%s3 + $0xc] sm:$0xf]
  %v73 = vld [vmem:[%s3 + $0x10] sm:$0xf]
  %v74 = vld [vmem:[%s3 + $0x14] sm:$0xf]
  %v75 = vld [vmem:[%s3 + $0x18] sm:$0xf]
  %v76 = vld [vmem:[%s3 + $0x1c] sm:$0xf]
  %v77 = vld [vmem:[%s3 + $0x20] sm:$0xf]
  %v78 = vld [vmem:[%s3 + $0x24] sm:$0xf]
  %v79 = vld [vmem:[%s3 + $0x28] sm:$0xf]
  %v80 = vld [vmem:[%s3 + $0x2c] sm:$0xf]
  %v81 = vld [vmem:[%s3 + $0x30] sm:$0xf]
  %v82 = vld [vmem:[%s3 + $0x34] sm:$0xf]
  %v83 = vld [vmem:[%s3 + $0x38] sm:$0xf]
  %v84 = vld [vmem:[%s3 + $0x3c] sm:$0xf]
  %v85 = vld [vmem:[%s4] sm:$0x1]
  %v87 = vperm.slane %v85, 0
  %v105 = vunpack.c.l.b16 %v69
  %v106 = vunpack.c.l.b16 %v70
  %v107 = vunpack.c.l.b16 %v71
  %v108 = vunpack.c.l.b16 %v72
  %v109 = vunpack.c.l.b16 %v73
  %v110 = vunpack.c.l.b16 %v74
  %v111 = vunpack.c.l.b16 %v75
  %v112 = vunpack.c.l.b16 %v76
  %v113 = vunpack.c.l.b16 %v77
  %v114 = vunpack.c.l.b16 %v78
  %v115 = vunpack.c.l.b16 %v79
  %v116 = vunpack.c.l.b16 %v80
  %v117 = vunpack.c.l.b16 %v81
  %v118 = vunpack.c.l.b16 %v82
  %v119 = vunpack.c.l.b16 %v83
  %v120 = vunpack.c.l.b16 %v84
  %v121 = vpack.c.b16 %v106, %v105
  %v122 = vpack.c.b16 %v108, %v107
  %v123 = vpack.c.b16 %v110, %v109
  %v124 = vpack.c.b16 %v112, %v111
  %v125 = vpack.c.b16 %v114, %v113
  %v126 = vpack.c.b16 %v116, %v115
  %v127 = vpack.c.b16 %v118, %v117
  %v128 = vpack.c.b16 %v120, %v119
  %137 = vmatpush.bf16.msra.mxu0 %v128
  %138 = vmatpush.bf16.msra.mxu0 %v127
  %139 = vmatpush.bf16.msra.mxu0 %v126
  %140 = vmatpush.bf16.msra.mxu0 %v125
  %141 = vmatpush.bf16.msra.mxu0 %v124
  %142 = vmatpush.bf16.msra.mxu0 %v123
  %143 = vmatpush.bf16.msra.mxu0 %v122
  %144 = vmatpush.bf16.msra.mxu0 %v121
  %145 = vmatmul.bf16.gmra.mxu0 %v68
  %v146 = vpop.f32.mrf.mxu0
  %v147 = vadd.f32 %v87, %v146
  %v148 = vpop.f32.mrf.mxu0
  %v149 = vadd.f32 %v87, %v148
  %150 = vdwg.mxu0
  %vm151 = vcmask 64512
  %v152 = vsel %vm151, %v147, -inf
  %153 = vmax.xlane.f32.xlu0 %v152
  %v154 = vpop.xlane.xlu0 %153
  %v155 = vsel %vm151, %v149, -inf
  %156 = vmax.xlane.f32.xlu0 %v155
  %v157 = vpop.xlane.xlu0 %156
  %v158 = vsub.f32 %v147, %v154
  %v159 = vsub.f32 %v149, %v157
  %v160 = vmul.f32 %v158, 1.442695
  %v161 = vpow.pop %v160
  %v162 = vmul.f32 %v159, 1.442695
  %v163 = vpow.pop %v162
  %v164 = vsel %vm151, %v161, 0.0
  %165 = vadd.xlane.f32.xlu0 %v164
  %v166 = vpop.xlane.xlu0 %165
  %v167 = vsel %vm151, %v163, 0.0
  %168 = vadd.xlane.f32.xlu0 %v167
  %v169 = vpop.xlane.xlu0 %168
  %v170 = vrcp.pop %v166
  %v171 = vmul.f32 %v166, %v170
  %v172 = vsub.f32 1.0, %v171
  %v173 = vmul.f32 %v170, %v172
  %v174 = vadd.f32 %v170, %v173
  %vm175 = vweird.f32 %v166
  %vm176 = vweird.f32 %v170
  %vm177 = vmor %vm175, %vm176
  %v178 = vsel %vm177, %v170, %v174
  %v179 = vand.u32 2147483647, %v166
  %vm180 = vcmp.eq.f32.partialorder %v179, 8.507059e+37
  %v181 = vand.u32 %v166, 2147483648
  %v182 = vor.u32 1.1754944e-38, %v181
  %v183 = vsel %vm180, %v182, %v178
  %v184 = vmul.f32 %v161, %v183
  %v185 = vrcp.pop %v169
  %v186 = vmul.f32 %v169, %v185
  %v187 = vsub.f32 1.0, %v186
  %v188 = vmul.f32 %v185, %v187
  %v189 = vadd.f32 %v185, %v188
  %vm190 = vweird.f32 %v169
  %vm191 = vweird.f32 %v185
  %vm192 = vmor %vm190, %vm191
  %v193 = vsel %vm192, %v185, %v189
  %v194 = vand.u32 2147483647, %v169
  %vm195 = vcmp.eq.f32.partialorder %v194, 8.507059e+37
  %v196 = vand.u32 %v169, 2147483648
  %v197 = vor.u32 1.1754944e-38, %v196
  %v198 = vsel %vm195, %v197, %v193
  %v199 = vmul.f32 %v163, %v198
  %200 = vst.msk [vmem:[%s5] sm:$0xff] %vm151, %v184
  %201 = vst.msk [vmem:[%s5 + $0x8] sm:$0xff] %vm151, %v199
  // Predicated region
  $region22: #{tpu_custom_call.1} parent=0 // pred_check
    _
  $region23: #{tpu_custom_call.1} parent=0 // pred_check_branch
    %203 = sbr.rel (0) target = $region25
  $region24: #{tpu_custom_call.1} parent=0 // pred_region
    _
  $region25: #{tpu_custom_call.1} parent=0 // pred_fallthru
    _
  // Predicated region
  $region26: #{tpu_custom_call.1} parent=0 // pred_check
    _
  $region27: #{tpu_custom_call.1} parent=0 // pred_check_branch
    %205 = sbr.rel (0) target = $region29
  $region28: #{tpu_custom_call.1} parent=0 // pred_region
    _
  $region29: #{tpu_custom_call.1} parent=0 // pred_fallthru
    _

</llo_original>
